<compile_context>
chip_gen: v7x
topology: tpu7x:2x2x1
jax: 0.10.0
libtpu: 0.0.40
codegen_flags: <defaults>
</compile_context>

<pallas_src>
import jax
import jax.numpy as jnp
from jax import lax
from jax.experimental import pallas as pl
from jax.experimental.pallas import tpu as pltpu


_LANE = 128  # TPU lane width; hidden dim and batch tile are padded to this.


def _round_up(x, m):
    return ((x + m - 1) // m) * m


def _qfunction_kernel(obs_ref, act_ref,
                      w1o_ref, w1a_ref, b1_ref,
                      w2_ref, b2_ref,
                      w3_ref, b3_ref,
                      o_ref):
    # bf16 operands on the MXU, f32 accumulation everywhere.
    obs = obs_ref[...].astype(jnp.bfloat16)
    act = act_ref[...].astype(jnp.bfloat16)

    # Layer 1: cat([obs, action]) @ W1 == obs @ W1_obs + action @ W1_act (no concat).
    h1 = (jnp.dot(obs, w1o_ref[...], preferred_element_type=jnp.float32)
          + jnp.dot(act, w1a_ref[...], preferred_element_type=jnp.float32)
          + b1_ref[...])
    h1 = jnp.maximum(h1, 0.0).astype(jnp.bfloat16)                    # (TB, Hp)

    # Layer 2: Linear + ReLU (Hp = hidden padded to 128; padded cols stay 0).
    h2 = jnp.dot(h1, w2_ref[...], preferred_element_type=jnp.float32) + b2_ref[...]
    h2 = jnp.maximum(h2, 0.0).astype(jnp.bfloat16)                    # (TB, Hp)

    # Layer 3 (head): w3 stored as a (1, Hp) row; contract over Hp to get a
    # (1, TB) lane-dense q tile (TB is a multiple of 128 -> unmasked vst).
    q_row = lax.dot_general(w3_ref[...], h2,
                            dimension_numbers=(((1,), (1,)), ((), ())),
                            preferred_element_type=jnp.float32)       # (1, TB)
    o_ref[...] = (q_row + b3_ref[...]).astype(o_ref.dtype)


def prepare_qfunction_params(params, obs_dim):
    """One-time repack of (PyTorch-transposed) params into TPU-friendly shapes.

    * Splits w1 along its input dim into obs/action halves.
    * Zero-pads the hidden dim to a multiple of 128 lanes.
    * Stores the output head w3 as a (1, hp) bf16 row (transposed) so the
      kernel can emit a (1, TB) lane-dense output instead of a padded slab.
    * Weights are bf16 (MXU operands); biases stay f32 (added post-accum).
    All padding is zeros, so padded hidden columns are ReLU(0)=0 and do not
    affect the result.
    """
    w1, b1 = params["w1"], params["b1"]        # (d_in, H), (1, H)
    w2, b2 = params["w2"], params["b2"]        # (H, H),   (1, H)
    w3, b3 = params["w3"], params["b3"]        # (H, 1),   (1, 1)
    act_dim = w1.shape[0] - obs_dim
    hidden = w2.shape[0]
    hp = max(_round_up(hidden, _LANE), _LANE)

    def pad_to(x, shape, dtype):
        out = jnp.zeros(shape, dtype)
        return out.at[: x.shape[0], : x.shape[1]].set(x.astype(dtype))

    return {
        "w1_obs": pad_to(w1[:obs_dim], (obs_dim, hp), jnp.bfloat16),
        "w1_act": pad_to(w1[obs_dim:], (act_dim, hp), jnp.bfloat16),
        "b1": pad_to(b1, (1, hp), jnp.float32),
        "w2": pad_to(w2, (hp, hp), jnp.bfloat16),
        "b2": pad_to(b2, (1, hp), jnp.float32),
        "w3": pad_to(w3.T, (1, hp), jnp.bfloat16),   # head as a row
        "b3": b3.astype(jnp.float32).reshape(1, 1),
    }


def qfunction_forward(obs, action, prepared, *, batch_tile=512):
    """Pallas-backed forward of QFunction.

    obs:      (B, obs_dim) float32
    action:   (B, action_dim) float32
    prepared: output of prepare_qfunction_params
    returns   (B, 1) float32
    """
    assert obs.shape[0] == action.shape[0]
    B, obs_dim = obs.shape
    act_dim = action.shape[1]
    hp = prepared["w2"].shape[0]
    d_in = obs_dim + act_dim

    # Lane-dense batch tile (multiple of 128).  Large default amortizes the
    # ~0.35 us per-grid-step overhead; halve it if that would leave only one
    # grid step so the "parallel" axis can shard across v7x's two TensorCores.
    tb = min(batch_tile, _round_up(B, _LANE))
    tb = max(_round_up(tb, _LANE), _LANE)
    while tb >= 2 * _LANE and pl.cdiv(B, tb) < 2:
        tb = _round_up(tb // 2, _LANE)

    # Zero-pad the batch to a multiple of the tile (no whole-batch fallback:
    # VMEM usage stays bounded for any B, incl. v7x's 64 MiB).  Padded rows
    # produce garbage q-values that are dropped below.
    Bp = _round_up(B, tb)
    if Bp != B:
        obs = jnp.pad(obs, ((0, Bp - B), (0, 0)))
        action = jnp.pad(action, ((0, Bp - B), (0, 0)))

    grid = (Bp // tb,)
    batch_map = lambda i: (i, 0)   # activation tiles along the batch
    out_map = lambda i: (0, i)     # (1, TB) output tiles along the lane axis
    pinned = lambda i: (0, 0)      # weights/biases resident across the grid
    pin = dict(pipeline_mode=pl.Buffered(1))  # constants: no double buffer

    # Advisory cost hint so XLA schedules/overlaps this small kernel sensibly.
    flops = 2 * B * (d_in * hp + hp * hp + hp)
    bytes_accessed = (B * d_in * 4 + B * 4                      # activations + q
                      + (d_in * hp + hp * hp + hp) * 2          # bf16 weights
                      + (2 * hp + 1) * 4)                       # f32 biases

    q_row = pl.pallas_call(
        _qfunction_kernel,
        out_shape=jax.ShapeDtypeStruct((1, Bp), jnp.float32),
        grid=grid,
        in_specs=[
            pl.BlockSpec((tb, obs_dim), batch_map),
            pl.BlockSpec((tb, act_dim), batch_map),
            pl.BlockSpec((obs_dim, hp), pinned, **pin),
            pl.BlockSpec((act_dim, hp), pinned, **pin),
            pl.BlockSpec((1, hp), pinned, **pin),
            pl.BlockSpec((hp, hp), pinned, **pin),
            pl.BlockSpec((1, hp), pinned, **pin),
            pl.BlockSpec((1, hp), pinned, **pin),
            pl.BlockSpec((1, 1), pinned, **pin),
        ],
        out_specs=pl.BlockSpec((1, tb), out_map),
        compiler_params=pltpu.CompilerParams(
            dimension_semantics=("parallel",)),
        cost_estimate=pl.CostEstimate(
            flops=flops, transcendentals=0, bytes_accessed=bytes_accessed),
    )(
        obs, action,
        prepared["w1_obs"], prepared["w1_act"], prepared["b1"],
        prepared["w2"], prepared["b2"],
        prepared["w3"], prepared["b3"],
    )
    # q lives along the lane axis of a (1, Bp) row; drop batch padding, reshape.
    return q_row[0, :B].reshape(B, 1)


def init_qfunction_params(key, obs_dim, action_dim, hidden_dim):
    """Deterministic synthetic init (PyTorch-Linear-like uniform ranges)."""
    d_in = obs_dim + action_dim
    k1, k2, k3, k4, k5, k6 = jax.random.split(key, 6)

    def u(k, shape, fan_in):
        bound = 1.0 / jnp.sqrt(fan_in)
        return jax.random.uniform(k, shape, jnp.float32, -bound, bound)

    return {
        # stored as (in_features, out_features) = PyTorch weight transposed
        "w1": u(k1, (d_in, hidden_dim), d_in),
        "b1": u(k2, (1, hidden_dim), d_in),
        "w2": u(k3, (hidden_dim, hidden_dim), hidden_dim),
        "b2": u(k4, (1, hidden_dim), hidden_dim),
        "w3": u(k5, (hidden_dim, 1), hidden_dim),
        "b3": u(k6, (1, 1), hidden_dim),
    }


def qfunction_reference(obs, action, params):
    """Pure-JAX reference (matches the PyTorch module)."""
    x = jnp.concatenate([obs, action], axis=1)
    h1 = jnp.maximum(x @ params["w1"] + params["b1"], 0.0)
    h2 = jnp.maximum(h1 @ params["w2"] + params["b2"], 0.0)
    return h2 @ params["w3"] + params["b3"]


if __name__ == "__main__":
    # Small shapes consistent with the module's forward.  batch=200 with
    # batch_tile=128 exercises the ragged-batch padding path AND a multi-step
    # grid (tb=128, Bp=256, grid=(2,)).
    batch, obs_dim, action_dim, hidden_dim = 200, 17, 6, 32

    key = jax.random.PRNGKey(0)
    k_obs, k_act, k_params = jax.random.split(key, 3)

    obs = jax.random.normal(k_obs, (batch, obs_dim), jnp.float32)
    action = jax.random.normal(k_act, (batch, action_dim), jnp.float32)
    params = init_qfunction_params(k_params, obs_dim, action_dim, hidden_dim)
    prepared = prepare_qfunction_params(params, obs_dim)

    q = qfunction_forward(obs, action, prepared, batch_tile=128)
    q = jax.block_until_ready(q)

    q_ref = qfunction_reference(obs, action, params)
    assert q.shape == (batch, 1), q.shape
    # bf16 MXU operands with f32 accumulation: tolerance-equal, not bit-exact.
    assert jnp.allclose(q, q_ref, atol=5e-2, rtol=5e-2), (q, q_ref)

    print("KERNEL_OK")
</pallas_src>

<mosaic_0001>
module attributes {stable_mosaic.version = 11 : i64} {
  func.func @_qfunction_kernel(%arg0: i32, %arg1: memref<128x17xf32, #tpu.memory_space<vmem>>, %arg2: memref<128x6xf32, #tpu.memory_space<vmem>>, %arg3: memref<17x128xbf16, #tpu.memory_space<vmem>>, %arg4: memref<6x128xbf16, #tpu.memory_space<vmem>>, %arg5: memref<1x128xf32, #tpu.memory_space<vmem>>, %arg6: memref<128x128xbf16, #tpu.memory_space<vmem>>, %arg7: memref<1x128xf32, #tpu.memory_space<vmem>>, %arg8: memref<1x128xbf16, #tpu.memory_space<vmem>>, %arg9: memref<1x1xf32, #tpu.memory_space<vmem>>, %arg10: memref<1x128xf32, #tpu.memory_space<vmem>>) attributes {dimension_semantics = [#tpu.dimension_semantics<parallel>], iteration_bounds = array<i64: 2>, scalar_prefetch = 0 : i64, scratch_operands = 0 : i64, tpu.core_type = #tpu.core_type<tc>, window_params = [{transform_indices = @transform_0, window_bounds = array<i64: 128, 17>}, {transform_indices = @transform_1, window_bounds = array<i64: 128, 6>}, {pipeline_mode = #tpu.pipeline_mode<synchronous>, transform_indices = @transform_2, window_bounds = array<i64: 17, 128>}, {pipeline_mode = #tpu.pipeline_mode<synchronous>, transform_indices = @transform_3, window_bounds = array<i64: 6, 128>}, {pipeline_mode = #tpu.pipeline_mode<synchronous>, transform_indices = @transform_4, window_bounds = array<i64: 1, 128>}, {pipeline_mode = #tpu.pipeline_mode<synchronous>, transform_indices = @transform_5, window_bounds = array<i64: 128, 128>}, {pipeline_mode = #tpu.pipeline_mode<synchronous>, transform_indices = @transform_6, window_bounds = array<i64: 1, 128>}, {pipeline_mode = #tpu.pipeline_mode<synchronous>, transform_indices = @transform_7, window_bounds = array<i64: 1, 128>}, {pipeline_mode = #tpu.pipeline_mode<synchronous>, transform_indices = @transform_8, window_bounds = array<i64: 1, 1>}, {transform_indices = @transform_9, window_bounds = array<i64: 1, 128>}]} {
    %c0 = arith.constant 0 : index
    %c0_0 = arith.constant 0 : index
    %0 = vector.load %arg1[%c0, %c0_0] : memref<128x17xf32, #tpu.memory_space<vmem>>, vector<128x17xf32>
    %1 = arith.truncf %0 : vector<128x17xf32> to vector<128x17xbf16>
    %c0_1 = arith.constant 0 : index
    %c0_2 = arith.constant 0 : index
    %2 = vector.load %arg2[%c0_1, %c0_2] : memref<128x6xf32, #tpu.memory_space<vmem>>, vector<128x6xf32>
    %3 = arith.truncf %2 : vector<128x6xf32> to vector<128x6xbf16>
    %c0_3 = arith.constant 0 : index
    %c0_4 = arith.constant 0 : index
    %4 = vector.load %arg3[%c0_3, %c0_4] : memref<17x128xbf16, #tpu.memory_space<vmem>>, vector<17x128xbf16>
    %cst = arith.constant dense<0.000000e+00> : vector<128x128xf32>
    %5 = tpu.matmul %1, %4, %cst {dimension_numbers = #tpu.dot_dimension_numbers<[1], [0], [0], [1], [0, 0, 1, 1], [], []>} : vector<128x17xbf16>, vector<17x128xbf16>, vector<128x128xf32> -> vector<128x128xf32>
    %c0_5 = arith.constant 0 : index
    %c0_6 = arith.constant 0 : index
    %6 = vector.load %arg4[%c0_5, %c0_6] : memref<6x128xbf16, #tpu.memory_space<vmem>>, vector<6x128xbf16>
    %cst_7 = arith.constant dense<0.000000e+00> : vector<128x128xf32>
    %7 = tpu.matmul %3, %6, %cst_7 {dimension_numbers = #tpu.dot_dimension_numbers<[1], [0], [0], [1], [0, 0, 1, 1], [], []>} : vector<128x6xbf16>, vector<6x128xbf16>, vector<128x128xf32> -> vector<128x128xf32>
    %8 = arith.addf %5, %7 : vector<128x128xf32>
    %c0_8 = arith.constant 0 : index
    %c0_9 = arith.constant 0 : index
    %9 = vector.load %arg5[%c0_8, %c0_9] : memref<1x128xf32, #tpu.memory_space<vmem>>, vector<1x128xf32>
    %10 = vector.broadcast %9 : vector<1x128xf32> to vector<128x128xf32>
    %11 = arith.addf %8, %10 : vector<128x128xf32>
    %cst_10 = arith.constant 0.000000e+00 : f32
    %12 = vector.broadcast %cst_10 : f32 to vector<128x128xf32>
    %13 = arith.maximumf %11, %12 : vector<128x128xf32>
    %14 = arith.truncf %13 : vector<128x128xf32> to vector<128x128xbf16>
    %c0_11 = arith.constant 0 : index
    %c0_12 = arith.constant 0 : index
    %15 = vector.load %arg6[%c0_11, %c0_12] : memref<128x128xbf16, #tpu.memory_space<vmem>>, vector<128x128xbf16>
    %cst_13 = arith.constant dense<0.000000e+00> : vector<128x128xf32>
    %16 = tpu.matmul %14, %15, %cst_13 {dimension_numbers = #tpu.dot_dimension_numbers<[1], [0], [0], [1], [0, 0, 1, 1], [], []>} : vector<128x128xbf16>, vector<128x128xbf16>, vector<128x128xf32> -> vector<128x128xf32>
    %c0_14 = arith.constant 0 : index
    %c0_15 = arith.constant 0 : index
    %17 = vector.load %arg7[%c0_14, %c0_15] : memref<1x128xf32, #tpu.memory_space<vmem>>, vector<1x128xf32>
    %18 = vector.broadcast %17 : vector<1x128xf32> to vector<128x128xf32>
    %19 = arith.addf %16, %18 : vector<128x128xf32>
    %cst_16 = arith.constant 0.000000e+00 : f32
    %20 = vector.broadcast %cst_16 : f32 to vector<128x128xf32>
    %21 = arith.maximumf %19, %20 : vector<128x128xf32>
    %22 = arith.truncf %21 : vector<128x128xf32> to vector<128x128xbf16>
    %c0_17 = arith.constant 0 : index
    %c0_18 = arith.constant 0 : index
    %23 = vector.load %arg8[%c0_17, %c0_18] : memref<1x128xbf16, #tpu.memory_space<vmem>>, vector<1x128xbf16>
    %cst_19 = arith.constant dense<0.000000e+00> : vector<1x128xf32>
    %24 = tpu.matmul %23, %22, %cst_19 {dimension_numbers = #tpu.dot_dimension_numbers<[1], [1], [0], [0], [0, 0, 1, 0], [], []>} : vector<1x128xbf16>, vector<128x128xbf16>, vector<1x128xf32> -> vector<1x128xf32>
    %c0_20 = arith.constant 0 : index
    %c0_21 = arith.constant 0 : index
    %25 = vector.load %arg9[%c0_20, %c0_21] : memref<1x1xf32, #tpu.memory_space<vmem>>, vector<1x1xf32>
    %26 = vector.broadcast %25 : vector<1x1xf32> to vector<1x128xf32>
    %27 = arith.addf %24, %26 : vector<1x128xf32>
    %c0_22 = arith.constant 0 : index
    %c0_23 = arith.constant 0 : index
    %28 = vector.load %arg10[%c0_22, %c0_23] : memref<1x128xf32, #tpu.memory_space<vmem>>, vector<1x128xf32>
    tpu.vector_store %arg10[%c0_22, %c0_23], %27 {strides = array<i32>} : memref<1x128xf32, #tpu.memory_space<vmem>>, vector<1x128xf32>,
    return
  }
  func.func @transform_0(%arg0: i32) -> (i32, i32) {
    %c0_i32 = arith.constant 0 : i32
    %c0_i32_0 = arith.constant 0 : i32
    return %arg0, %c0_i32 : i32, i32
  }
  func.func @transform_1(%arg0: i32) -> (i32, i32) {
    %c0_i32 = arith.constant 0 : i32
    %c0_i32_0 = arith.constant 0 : i32
    return %arg0, %c0_i32 : i32, i32
  }
  func.func @transform_2(%arg0: i32) -> (i32, i32) {
    %c0_i32 = arith.constant 0 : i32
    %c0_i32_0 = arith.constant 0 : i32
    %c0_i32_1 = arith.constant 0 : i32
    return %c0_i32, %c0_i32_0 : i32, i32
  }
  func.func @transform_3(%arg0: i32) -> (i32, i32) {
    %c0_i32 = arith.constant 0 : i32
    %c0_i32_0 = arith.constant 0 : i32
    %c0_i32_1 = arith.constant 0 : i32
    return %c0_i32, %c0_i32_0 : i32, i32
  }
  func.func @transform_4(%arg0: i32) -> (i32, i32) {
    %c0_i32 = arith.constant 0 : i32
    %c0_i32_0 = arith.constant 0 : i32
    %c0_i32_1 = arith.constant 0 : i32
    return %c0_i32, %c0_i32_0 : i32, i32
  }
  func.func @transform_5(%arg0: i32) -> (i32, i32) {
    %c0_i32 = arith.constant 0 : i32
    %c0_i32_0 = arith.constant 0 : i32
    %c0_i32_1 = arith.constant 0 : i32
    return %c0_i32, %c0_i32_0 : i32, i32
  }
  func.func @transform_6(%arg0: i32) -> (i32, i32) {
    %c0_i32 = arith.constant 0 : i32
    %c0_i32_0 = arith.constant 0 : i32
    %c0_i32_1 = arith.constant 0 : i32
    return %c0_i32, %c0_i32_0 : i32, i32
  }
  func.func @transform_7(%arg0: i32) -> (i32, i32) {
    %c0_i32 = arith.constant 0 : i32
    %c0_i32_0 = arith.constant 0 : i32
    %c0_i32_1 = arith.constant 0 : i32
    return %c0_i32, %c0_i32_0 : i32, i32
  }
  func.func @transform_8(%arg0: i32) -> (i32, i32) {
    %c0_i32 = arith.constant 0 : i32
    %c0_i32_0 = arith.constant 0 : i32
    %c0_i32_1 = arith.constant 0 : i32
    return %c0_i32, %c0_i32_0 : i32, i32
  }
  func.func @transform_9(%arg0: i32) -> (i32, i32) {
    %c0_i32 = arith.constant 0 : i32
    %c0_i32_0 = arith.constant 0 : i32
    return %c0_i32, %arg0 : i32, i32
  }
}

</mosaic_0001>

<llo_original>
// kernel: tpu_custom_call.1
$region0: #{tpu_custom_call.1}
  #allocation0 [shape = 'u32[]', space=smem, size = 0x4, offset = 0x4, fixed_abs, tag = 'smem constant byte address 0x4 - core index']
  #allocation1 [shape = 'u32[144,128]{1,0:T(1,128)}', space=vmem, size = 0x12000, scoped, tag = 'internal scratch']
  #allocation2 [shape = 'f32[1,1]{1,0:T(1,128)S(1)}', space=vmem, size = 0x200, scoped, tag = 'scoped memory for tpu_custom_call.1']
  %s0 = inlined_call_operand.vmem [shape: f32[256,17], index: 0, kind: input, shape index: {}]
  %s1 = inlined_call_operand.vmem [shape: f32[256,6], index: 1, kind: input, shape index: {}]
  %s2 = inlined_call_operand.vmem [shape: bf16[17,128], index: 2, kind: input, shape index: {}]
  %s3 = inlined_call_operand.vmem [shape: bf16[6,128], index: 3, kind: input, shape index: {}]
  %s4 = inlined_call_operand.vmem [shape: f32[1,128], index: 4, kind: input, shape index: {}]
  %s5 = inlined_call_operand.vmem [shape: bf16[128,128], index: 5, kind: input, shape index: {}]
  %s6 = inlined_call_operand.vmem [shape: f32[1,128], index: 6, kind: input, shape index: {}]
  %s7 = inlined_call_operand.vmem [shape: bf16[1,128], index: 7, kind: input, shape index: {}]
  %s8 = inlined_call_operand.<no memory space> [shape: f32[1,1], index: 8, kind: input, shape index: {}]
  %s9 = inlined_call_operand.hbm [shape: f32[1,256], index: 9, kind: output, shape index: {}]
  %s10 = sld [smem:[#allocation0]]
  $region69: #{tpu_custom_call.1} parent=0
    _
  %s12 = ssub.s32 1, %s10
  %s13 = scalar_select 0, %s12, %s10
  %v14 = vstv %s8
  %15 = vst [vmem:[#allocation2] sm:$0x1] %v14
  $region1: #{tpu_custom_call.1} parent=0
    #allocation3 [shape = 'u8[1024]{0}', space=vmem, size = 0x400, scoped, tag = 'output window, operand 0']
    #allocation4 [shape = 's32[2]{0}', space=sflag, size = 0x8, scoped, tag = 'scoped memory for tpu_custom_call.1']
    %16 = vsyncpa [#allocation4], 0
    %s17 = scalar_lea.sflag [#allocation4], 1
    %18 = vsyncpa %s17, 0
    loop: start=0, step=1, limit=4
    $region2: #{tpu_custom_call.1} parent=1 // loop_pre_header
      _
    $region3: #{tpu_custom_call.1} parent=1 // loop_header
      %s20 = sphi 0, %s24
      %p21 = scmp.ge.s32.totalorder %s20, 4
      %s30 = sphi 0, %s32
      %s33 = sphi 0, %s30
      %s34 = sphi 0, %s33
      %s50 = sphi 0, %s34
      %s56 = sphi 0, %s58
      %s59 = sphi 0, %s56
      %s60 = sphi 0, %s59
      %s76 = sphi 0, %s60
      %s80 = sphi 0, %s80
      %s82 = sphi 0, %s80
      %s83 = sphi 0, %s82
      %s97 = sphi 0, %s83
      %s101 = sphi 0, %s101
      %s103 = sphi 0, %s101
      %s104 = sphi 0, %s103
      %s118 = sphi 0, %s104
      %s122 = sphi 0, %s122
      %s124 = sphi 0, %s122
      %s125 = sphi 0, %s124
      %s139 = sphi 0, %s125
      %s143 = sphi 0, %s143
      %s145 = sphi 0, %s143
      %s146 = sphi 0, %s145
      %s160 = sphi 0, %s146
      %s164 = sphi 0, %s164
      %s166 = sphi 0, %s164
      %s167 = sphi 0, %s166
      %s181 = sphi 0, %s167
      %s185 = sphi 0, %s185
      %s187 = sphi 0, %s185
      %s188 = sphi 0, %s187
      %s202 = sphi 0, %s188
      %s206 = sphi 0, %s206
      %s208 = sphi 0, %s206
      %s209 = sphi 0, %s208
      %s223 = sphi 0, %s209
      %s229 = sphi 0, %s231
      %s232 = sphi 0, %s229
      %s233 = sphi 0, %s232
      %s249 = sphi 0, %s233
    $region4: #{tpu_custom_call.1} parent=1 // loop_header_branch
      %23 = sbr.rel (%p21) target = $region8
    $region5: #{tpu_custom_call.1} parent=1 // loop_body
      %s25 = ssub.s32 %s20, 1
      %s26 = ssub.s32 %s20, 2
      %s27 = sadd.s32 %s20, 1
      %s28 = ssub.s32 %s20, %s27
      %p29 = scmp.eq.s32.totalorder %s28, 0
      %s31 = sadd.s32 %s30, 1
      %s32 = scalar_select %p29, %s30, %s31
      %p35 = pneg %p29
      %p36 = scmp.eq.s32.totalorder %s20, 1
      %p37 = por %p35, %p36
      %p38 = scmp.ne.s32.totalorder %s30, %s33
      %p39 = scmp.eq.s32.totalorder %s20, 0
      %p40 = por %p38, %p39
      %p41 = scmp.ne.s32.totalorder %s30, %s33
      %p42 = scmp.eq.s32.totalorder %s25, 1
      %p43 = por %p41, %p42
      %p44 = scmp.ne.s32.totalorder %s33, %s34
      %p45 = scmp.eq.s32.totalorder %s25, 0
      %p46 = por %p44, %p45
      %p47 = scmp.ne.s32.totalorder %s33, %s34
      %p48 = scmp.eq.s32.totalorder %s26, 1
      %p49 = por %p47, %p48
      %p51 = scmp.ne.s32.totalorder %s34, %s50
      %p52 = scmp.eq.s32.totalorder %s26, 0
      %p53 = por %p51, %p52
      %s54 = ssub.s32 %s20, %s27
      %p55 = scmp.eq.s32.totalorder %s54, 0
      %s57 = sadd.s32 %s56, 1
      %s58 = scalar_select %p55, %s56, %s57
      %p61 = pneg %p55
      %p62 = scmp.eq.s32.totalorder %s20, 1
      %p63 = por %p61, %p62
      %p64 = scmp.ne.s32.totalorder %s56, %s59
      %p65 = scmp.eq.s32.totalorder %s20, 0
      %p66 = por %p64, %p65
      %p67 = scmp.ne.s32.totalorder %s56, %s59
      %p68 = scmp.eq.s32.totalorder %s25, 1
      %p69 = por %p67, %p68
      %p70 = scmp.ne.s32.totalorder %s59, %s60
      %p71 = scmp.eq.s32.totalorder %s25, 0
      %p72 = por %p70, %p71
      %p73 = scmp.ne.s32.totalorder %s59, %s60
      %p74 = scmp.eq.s32.totalorder %s26, 1
      %p75 = por %p73, %p74
      %p77 = scmp.ne.s32.totalorder %s60, %s76
      %p78 = scmp.eq.s32.totalorder %s26, 0
      %p79 = por %p77, %p78
      %s81 = sadd.s32 %s80, 1
      %p84 = scmp.eq.s32.totalorder %s20, 1
      %p85 = scmp.ne.s32.totalorder %s80, %s82
      %p86 = scmp.eq.s32.totalorder %s20, 0
      %p87 = por %p85, %p86
      %p88 = scmp.ne.s32.totalorder %s80, %s82
      %p89 = scmp.eq.s32.totalorder %s25, 1
      %p90 = por %p88, %p89
      %p91 = scmp.ne.s32.totalorder %s82, %s83
      %p92 = scmp.eq.s32.totalorder %s25, 0
      %p93 = por %p91, %p92
      %p94 = scmp.ne.s32.totalorder %s82, %s83
      %p95 = scmp.eq.s32.totalorder %s26, 1
      %p96 = por %p94, %p95
      %p98 = scmp.ne.s32.totalorder %s83, %s97
      %p99 = scmp.eq.s32.totalorder %s26, 0
      %p100 = por %p98, %p99
      %s102 = sadd.s32 %s101, 1
      %p105 = scmp.eq.s32.totalorder %s20, 1
      %p106 = scmp.ne.s32.totalorder %s101, %s103
      %p107 = scmp.eq.s32.totalorder %s20, 0
      %p108 = por %p106, %p107
      %p109 = scmp.ne.s32.totalorder %s101, %s103
      %p110 = scmp.eq.s32.totalorder %s25, 1
      %p111 = por %p109, %p110
      %p112 = scmp.ne.s32.totalorder %s103, %s104
      %p113 = scmp.eq.s32.totalorder %s25, 0
      %p114 = por %p112, %p113
      %p115 = scmp.ne.s32.totalorder %s103, %s104
      %p116 = scmp.eq.s32.totalorder %s26, 1
      %p117 = por %p115, %p116
      %p119 = scmp.ne.s32.totalorder %s104, %s118
      %p120 = scmp.eq.s32.totalorder %s26, 0
      %p121 = por %p119, %p120
      %s123 = sadd.s32 %s122, 1
      %p126 = scmp.eq.s32.totalorder %s20, 1
      %p127 = scmp.ne.s32.totalorder %s122, %s124
      %p128 = scmp.eq.s32.totalorder %s20, 0
      %p129 = por %p127, %p128
      %p130 = scmp.ne.s32.totalorder %s122, %s124
      %p131 = scmp.eq.s32.totalorder %s25, 1
      %p132 = por %p130, %p131
      %p133 = scmp.ne.s32.totalorder %s124, %s125
      %p134 = scmp.eq.s32.totalorder %s25, 0
      %p135 = por %p133, %p134
      %p136 = scmp.ne.s32.totalorder %s124, %s125
      %p137 = scmp.eq.s32.totalorder %s26, 1
      %p138 = por %p136, %p137
      %p140 = scmp.ne.s32.totalorder %s125, %s139
      %p141 = scmp.eq.s32.totalorder %s26, 0
      %p142 = por %p140, %p141
      %s144 = sadd.s32 %s143, 1
      %p147 = scmp.eq.s32.totalorder %s20, 1
      %p148 = scmp.ne.s32.totalorder %s143, %s145
      %p149 = scmp.eq.s32.totalorder %s20, 0
      %p150 = por %p148, %p149
      %p151 = scmp.ne.s32.totalorder %s143, %s145
      %p152 = scmp.eq.s32.totalorder %s25, 1
      %p153 = por %p151, %p152
      %p154 = scmp.ne.s32.totalorder %s145, %s146
      %p155 = scmp.eq.s32.totalorder %s25, 0
      %p156 = por %p154, %p155
      %p157 = scmp.ne.s32.totalorder %s145, %s146
      %p158 = scmp.eq.s32.totalorder %s26, 1
      %p159 = por %p157, %p158
      %p161 = scmp.ne.s32.totalorder %s146, %s160
      %p162 = scmp.eq.s32.totalorder %s26, 0
      %p163 = por %p161, %p162
      %s165 = sadd.s32 %s164, 1
      %p168 = scmp.eq.s32.totalorder %s20, 1
      %p169 = scmp.ne.s32.totalorder %s164, %s166
      %p170 = scmp.eq.s32.totalorder %s20, 0
      %p171 = por %p169, %p170
      %p172 = scmp.ne.s32.totalorder %s164, %s166
      %p173 = scmp.eq.s32.totalorder %s25, 1
      %p174 = por %p172, %p173
      %p175 = scmp.ne.s32.totalorder %s166, %s167
      %p176 = scmp.eq.s32.totalorder %s25, 0
      %p177 = por %p175, %p176
      %p178 = scmp.ne.s32.totalorder %s166, %s167
      %p179 = scmp.eq.s32.totalorder %s26, 1
      %p180 = por %p178, %p179
      %p182 = scmp.ne.s32.totalorder %s167, %s181
      %p183 = scmp.eq.s32.totalorder %s26, 0
      %p184 = por %p182, %p183
      %s186 = sadd.s32 %s185, 1
      %p189 = scmp.eq.s32.totalorder %s20, 1
      %p190 = scmp.ne.s32.totalorder %s185, %s187
      %p191 = scmp.eq.s32.totalorder %s20, 0
      %p192 = por %p190, %p191
      %p193 = scmp.ne.s32.totalorder %s185, %s187
      %p194 = scmp.eq.s32.totalorder %s25, 1
      %p195 = por %p193, %p194
      %p196 = scmp.ne.s32.totalorder %s187, %s188
      %p197 = scmp.eq.s32.totalorder %s25, 0
      %p198 = por %p196, %p197
      %p199 = scmp.ne.s32.totalorder %s187, %s188
      %p200 = scmp.eq.s32.totalorder %s26, 1
      %p201 = por %p199, %p200
      %p203 = scmp.ne.s32.totalorder %s188, %s202
      %p204 = scmp.eq.s32.totalorder %s26, 0
      %p205 = por %p203, %p204
      %s207 = sadd.s32 %s206, 1
      %p210 = scmp.eq.s32.totalorder %s20, 1
      %p211 = scmp.ne.s32.totalorder %s206, %s208
      %p212 = scmp.eq.s32.totalorder %s20, 0
      %p213 = por %p211, %p212
      %p214 = scmp.ne.s32.totalorder %s206, %s208
      %p215 = scmp.eq.s32.totalorder %s25, 1
      %p216 = por %p214, %p215
      %p217 = scmp.ne.s32.totalorder %s208, %s209
      %p218 = scmp.eq.s32.totalorder %s25, 0
      %p219 = por %p217, %p218
      %p220 = scmp.ne.s32.totalorder %s208, %s209
      %p221 = scmp.eq.s32.totalorder %s26, 1
      %p222 = por %p220, %p221
      %p224 = scmp.ne.s32.totalorder %s209, %s223
      %p225 = scmp.eq.s32.totalorder %s26, 0
      %p226 = por %p224, %p225
      %s227 = ssub.s32 %s20, %s27
      %p228 = scmp.eq.s32.totalorder %s227, 0
      %s230 = sadd.s32 %s229, 1
      %s231 = scalar_select %p228, %s229, %s230
      %p234 = pneg %p228
      %p235 = scmp.eq.s32.totalorder %s20, 1
      %p236 = por %p234, %p235
      %p237 = scmp.ne.s32.totalorder %s229, %s232
      %p238 = scmp.eq.s32.totalorder %s20, 0
      %p239 = por %p237, %p238
      %p240 = scmp.ne.s32.totalorder %s229, %s232
      %p241 = scmp.eq.s32.totalorder %s25, 1
      %p242 = por %p240, %p241
      %p243 = scmp.ne.s32.totalorder %s232, %s233
      %p244 = scmp.eq.s32.totalorder %s25, 0
      %p245 = por %p243, %p244
      %p246 = scmp.ne.s32.totalorder %s232, %s233
      %p247 = scmp.eq.s32.totalorder %s26, 1
      %p248 = por %p246, %p247
      %p250 = scmp.ne.s32.totalorder %s233, %s249
      %p251 = scmp.eq.s32.totalorder %s26, 0
      %p252 = por %p250, %p251
      %p253 = scmp.le.s32.totalorder 1, %s20
      %p254 = scmp.lt.s32.totalorder %s20, 3
      %p255 = pnand %p253, %p254
      %p256 = pneg %p255
      // Predicated region
      $region9: #{tpu_custom_call.1} parent=5 // pred_check
        _
      $region10: #{tpu_custom_call.1} parent=5 // pred_check_branch
        %258 = sbr.rel (%p255) target = $region12
      $region11: #{tpu_custom_call.1} parent=5 // pred_region
        %s259 = ssub.s32 %s20, 1
        // Predicated region
        $region13: #{tpu_custom_call.1} parent=11 // pred_check
          %p260 = pneg %p93
        $region14: #{tpu_custom_call.1} parent=11 // pred_check_branch
          %262 = sbr.rel (%p260) target = $region16
        $region15: #{tpu_custom_call.1} parent=11 // pred_region
          _
        $region16: #{tpu_custom_call.1} parent=11 // pred_fallthru
          _
        // Predicated region
        $region17: #{tpu_custom_call.1} parent=11 // pred_check
          %p263 = pneg %p114
        $region18: #{tpu_custom_call.1} parent=11 // pred_check_branch
          %265 = sbr.rel (%p263) target = $region20
        $region19: #{tpu_custom_call.1} parent=11 // pred_region
          _
        $region20: #{tpu_custom_call.1} parent=11 // pred_fallthru
          _
        // Predicated region
        $region21: #{tpu_custom_call.1} parent=11 // pred_check
          %p266 = pneg %p135
        $region22: #{tpu_custom_call.1} parent=11 // pred_check_branch
          %268 = sbr.rel (%p266) target = $region24
        $region23: #{tpu_custom_call.1} parent=11 // pred_region
          _
        $region24: #{tpu_custom_call.1} parent=11 // pred_fallthru
          _
        // Predicated region
        $region25: #{tpu_custom_call.1} parent=11 // pred_check
          %p269 = pneg %p156
        $region26: #{tpu_custom_call.1} parent=11 // pred_check_branch
          %271 = sbr.rel (%p269) target = $region28
        $region27: #{tpu_custom_call.1} parent=11 // pred_region
          _
        $region28: #{tpu_custom_call.1} parent=11 // pred_fallthru
          _
        // Predicated region
        $region29: #{tpu_custom_call.1} parent=11 // pred_check
          %p272 = pneg %p177
        $region30: #{tpu_custom_call.1} parent=11 // pred_check_branch
          %274 = sbr.rel (%p272) target = $region32
        $region31: #{tpu_custom_call.1} parent=11 // pred_region
          _
        $region32: #{tpu_custom_call.1} parent=11 // pred_fallthru
          _
        // Predicated region
        $region33: #{tpu_custom_call.1} parent=11 // pred_check
          %p275 = pneg %p198
        $region34: #{tpu_custom_call.1} parent=11 // pred_check_branch
          %277 = sbr.rel (%p275) target = $region36
        $region35: #{tpu_custom_call.1} parent=11 // pred_region
          _
        $region36: #{tpu_custom_call.1} parent=11 // pred_fallthru
          _
        // Predicated region
        $region37: #{tpu_custom_call.1} parent=11 // pred_check
          %p278 = pneg %p219
        $region38: #{tpu_custom_call.1} parent=11 // pred_check_branch
          %280 = sbr.rel (%p278) target = $region40
        $region39: #{tpu_custom_call.1} parent=11 // pred_region
          _
        $region40: #{tpu_custom_call.1} parent=11 // pred_fallthru
          _
      $region12: #{tpu_custom_call.1} parent=5 // pred_fallthru
        _
      %p281 = scmp.lt.s32.totalorder %s20, 2
      // Predicated region
      $region41: #{tpu_custom_call.1} parent=5 // pred_check
        %p282 = pneg %p281
      $region42: #{tpu_custom_call.1} parent=5 // pred_check_branch
        %284 = sbr.rel (%p282) target = $region44
      $region43: #{tpu_custom_call.1} parent=5 // pred_region
        // Predicated region
        $region45: #{tpu_custom_call.1} parent=43 // pred_check
          %p285 = pneg %p40
        $region46: #{tpu_custom_call.1} parent=43 // pred_check_branch
          %287 = sbr.rel (%p285) target = $region48
        $region47: #{tpu_custom_call.1} parent=43 // pred_region
          %s288 = smul.u32 16, %s20
          %p289 = scmp.lt.s32.totalorder %s288, 31
          %s290 = scalar_select %p289, %s288, 31
          %s291 = smul.addr %s290, 8
          %s292 = scalar_lea.vmem %s0, %s291
          %s293 = smul.u32 16, %s20
        $region48: #{tpu_custom_call.1} parent=43 // pred_fallthru
          _
        // Predicated region
        $region49: #{tpu_custom_call.1} parent=43 // pred_check
          %p294 = pneg %p66
        $region50: #{tpu_custom_call.1} parent=43 // pred_check_branch
          %296 = sbr.rel (%p294) target = $region52
        $region51: #{tpu_custom_call.1} parent=43 // pred_region
          %s297 = smul.u32 16, %s20
          %p298 = scmp.lt.s32.totalorder %s297, 31
          %s299 = scalar_select %p298, %s297, 31
          %s300 = smul.addr %s299, 8
          %s301 = scalar_lea.vmem %s1, %s300
          %s302 = smul.u32 16, %s20
        $region52: #{tpu_custom_call.1} parent=43 // pred_fallthru
          _
      $region44: #{tpu_custom_call.1} parent=5 // pred_fallthru
        _
      %p303 = scmp.le.s32.totalorder 1, %s20
      %p304 = scmp.lt.s32.totalorder %s20, 3
      %p305 = pnand %p303, %p304
      %p306 = pneg %p305
      // Predicated region
      $region53: #{tpu_custom_call.1} parent=5 // pred_check
        _
      $region54: #{tpu_custom_call.1} parent=5 // pred_check_branch
        %308 = sbr.rel (%p305) target = $region56
      $region55: #{tpu_custom_call.1} parent=5 // pred_region
        %s309 = ssub.s32 %s20, 1
        %s310 = smul.u32 16, %s25
        %p311 = scmp.lt.s32.totalorder %s310, 31
        %s312 = scalar_select %p311, %s310, 31
        %s313 = smul.addr %s312, 8
        %s314 = scalar_lea.vmem %s0, %s313
        %p315 = pneg %p46
        %p316 = pneg %p43
        %s317 = smul.u32 16, %s25
        %p318 = scmp.lt.s32.totalorder %s317, 31
        %s319 = scalar_select %p318, %s317, 31
        %s320 = smul.addr %s319, 8
        %s321 = scalar_lea.vmem %s1, %s320
        %p322 = pneg %p72
        %p323 = pneg %p69
        %p324 = pneg %p93
        %p325 = pneg %p90
        %p326 = pneg %p114
        %p327 = pneg %p111
        %p328 = pneg %p135
        %p329 = pneg %p132
        %p330 = pneg %p156
        %p331 = pneg %p153
        %p332 = pneg %p177
        %p333 = pneg %p174
        %p334 = pneg %p198
        %p335 = pneg %p195
        %p336 = pneg %p219
        %p337 = pneg %p216
        %p338 = pneg %p245
        %p339 = pneg %p242
        %s340 = sand.u32 %s232, 1
        %s341 = scalar_lea.sflag [#allocation4], %s340
        %s342 = sand.u32 %s232, 1
        %s343 = scalar_lea.vmem [#allocation3], %s342
        %s344 = smul.u32 16, %s25
        %p345 = scmp.lt.s32.totalorder %s344, 31
        %s346 = scalar_select %p345, %s344, 31
        %s347 = smul.addr %s346, 8
        %s348 = scalar_lea.vmem %s0, %s347
        %s349 = smul.u32 16, %s25
        %s350 = smul.u32 16, %s25
        %p351 = scmp.lt.s32.totalorder %s350, 31
        %s352 = scalar_select %p351, %s350, 31
        %s353 = smul.addr %s352, 8
        %s354 = scalar_lea.vmem %s1, %s353
        %s355 = smul.u32 16, %s25
        %v357 = vld [vmem:[%s348] sm:$0xff]
        %v358 = vld [vmem:[%s348 + $0x8] sm:$0xff]
        %v359 = vld [vmem:[%s348 + $0x10] sm:$0xff]
        %v360 = vld [vmem:[%s348 + $0x18] sm:$0xff]
        %v361 = vld [vmem:[%s348 + $0x20] sm:$0xff]
        %v362 = vld [vmem:[%s348 + $0x28] sm:$0xff]
        %v363 = vld [vmem:[%s348 + $0x30] sm:$0xff]
        %v364 = vld [vmem:[%s348 + $0x38] sm:$0xff]
        %v365 = vld [vmem:[%s348 + $0x40] sm:$0xff]
        %v366 = vld [vmem:[%s348 + $0x48] sm:$0xff]
        %v367 = vld [vmem:[%s348 + $0x50] sm:$0xff]
        %v368 = vld [vmem:[%s348 + $0x58] sm:$0xff]
        %v369 = vld [vmem:[%s348 + $0x60] sm:$0xff]
        %v370 = vld [vmem:[%s348 + $0x68] sm:$0xff]
        %v371 = vld [vmem:[%s348 + $0x70] sm:$0xff]
        %v372 = vld [vmem:[%s348 + $0x78] sm:$0xff]
        %v373 = vpack.c.bf16 %v358, %v357
        %v374 = vpack.c.bf16 %v360, %v359
        %v375 = vpack.c.bf16 %v362, %v361
        %v376 = vpack.c.bf16 %v364, %v363
        %v377 = vpack.c.bf16 %v366, %v365
        %v378 = vpack.c.bf16 %v368, %v367
        %v379 = vpack.c.bf16 %v370, %v369
        %v380 = vpack.c.bf16 %v372, %v371
        %v381 = vld [vmem:[%s354] sm:$0xff]
        %v382 = vld [vmem:[%s354 + $0x8] sm:$0xff]
        %v383 = vld [vmem:[%s354 + $0x10] sm:$0xff]
        %v384 = vld [vmem:[%s354 + $0x18] sm:$0xff]
        %v385 = vld [vmem:[%s354 + $0x20] sm:$0xff]
        %v386 = vld [vmem:[%s354 + $0x28] sm:$0xff]
        %v387 = vld [vmem:[%s354 + $0x30] sm:$0xff]
        %v388 = vld [vmem:[%s354 + $0x38] sm:$0xff]
        %v389 = vld [vmem:[%s354 + $0x40] sm:$0xff]
        %v390 = vld [vmem:[%s354 + $0x48] sm:$0xff]
        %v391 = vld [vmem:[%s354 + $0x50] sm:$0xff]
        %v392 = vld [vmem:[%s354 + $0x58] sm:$0xff]
        %v393 = vld [vmem:[%s354 + $0x60] sm:$0xff]
        %v394 = vld [vmem:[%s354 + $0x68] sm:$0xff]
        %v395 = vld [vmem:[%s354 + $0x70] sm:$0xff]
        %v396 = vld [vmem:[%s354 + $0x78] sm:$0xff]
        %v397 = vpack.c.bf16 %v382, %v381
        %v398 = vpack.c.bf16 %v384, %v383
        %v399 = vpack.c.bf16 %v386, %v385
        %v400 = vpack.c.bf16 %v388, %v387
        %v401 = vpack.c.bf16 %v390, %v389
        %v402 = vpack.c.bf16 %v392, %v391
        %v403 = vpack.c.bf16 %v394, %v393
        %v404 = vpack.c.bf16 %v396, %v395
        %v405 = vld [vmem:[%s2] sm:$0xf]
        %v406 = vld [vmem:[%s2 + $0x4] sm:$0xf]
        %v407 = vld [vmem:[%s2 + $0x8] sm:$0x1]
        %v408 = vld [vmem:[%s3] sm:$0x7]
        %vm409 = vcmask 48128
        %v411 = vsel %vm409, %v397, 0
        %v414 = vsel %vm409, %v398, 0
        %v417 = vsel %vm409, %v399, 0
        %v420 = vsel %vm409, %v400, 0
        %v423 = vsel %vm409, %v401, 0
        %v426 = vsel %vm409, %v402, 0
        %v429 = vsel %vm409, %v403, 0
        %v432 = vsel %vm409, %v404, 0
        %vm434 = vcmask 1042432
        %v436 = vsel %vm434, %v408, 0
        %438 = vmatprep.subr.bf16.mxu0 0
        %439 = vmatpush1.bf16.msra.mxu0 %v436
        %440 = vmatprep.subr.bf16.mxu0 0
        %441 = vmatpush1.bf16.msra.mxu0 0
        %442 = vmatprep.subr.bf16.mxu0 0
        %443 = vmatpush1.bf16.msra.mxu0 0
        %444 = vmatprep.subr.bf16.mxu0 0
        %445 = vmatpush1.bf16.msra.mxu0 0
        %446 = vmatprep.subr.bf16.mxu0 0
        %447 = vmatpush1.bf16.msra.mxu0 0
        %448 = vmatprep.subr.bf16.mxu0 0
        %449 = vmatpush1.bf16.msra.mxu0 0
        %450 = vmatprep.subr.bf16.mxu0 0
        %451 = vmatpush1.bf16.msra.mxu0 0
        %452 = vmatprep.subr.bf16.mxu0 0
        %453 = vmatpush1.bf16.msra.mxu0 0
        %454 = vmatprep.subr.bf16.mxu0 0
        %455 = vmatpush1.bf16.msra.mxu0 0
        %456 = vmatprep.subr.bf16.mxu0 0
        %457 = vmatpush1.bf16.msra.mxu0 0
        %458 = vmatprep.subr.bf16.mxu0 0
        %459 = vmatpush1.bf16.msra.mxu0 0
        %460 = vmatprep.subr.bf16.mxu0 0
        %461 = vmatpush1.bf16.msra.mxu0 0
        %462 = vmatprep.subr.bf16.mxu0 0
        %463 = vmatpush1.bf16.msra.mxu0 0
        %464 = vmatprep.subr.bf16.mxu0 0
        %465 = vmatpush1.bf16.msra.mxu0 0
        %466 = vmatprep.subr.bf16.mxu0 0
        %467 = vmatpush1.bf16.msra.mxu0 0
        %468 = vmatprep.subr.bf16.mxu0 0
        %469 = vmatpush1.bf16.msra.mxu0 0
        %470 = vmatprep.mubr.bf16.mxu0 0
        %471 = vmatmul.mubr.bf16.gmra.mrb[0].mxu0 %v411
        %v472 = vpop.f32.mrb[0].mxu0
        %v473 = vadd.f32 0.0, %v472
        %v474 = vpop.f32.mrb[0].mxu0
        %v475 = vpop.f32.mrb[0].mxu0
        %v476 = vadd.f32 0.0, %v475
        %v477 = vpop.f32.mrb[0].mxu0
        %478 = vmatprep.mubr.bf16.mxu0 0
        %479 = vmatmul.mubr.bf16.gmra.mrb[0].mxu0 %v414
        %v480 = vpop.f32.mrb[0].mxu0
        %v481 = vadd.f32 0.0, %v480
        %v482 = vpop.f32.mrb[0].mxu0
        %v483 = vpop.f32.mrb[0].mxu0
        %v484 = vadd.f32 0.0, %v483
        %v485 = vpop.f32.mrb[0].mxu0
        %486 = vmatprep.mubr.bf16.mxu0 0
        %487 = vmatmul.mubr.bf16.gmra.mrb[0].mxu0 %v417
        %v488 = vpop.f32.mrb[0].mxu0
        %v489 = vadd.f32 0.0, %v488
        %v490 = vpop.f32.mrb[0].mxu0
        %v491 = vpop.f32.mrb[0].mxu0
        %v492 = vadd.f32 0.0, %v491
        %v493 = vpop.f32.mrb[0].mxu0
        %494 = vmatprep.mubr.bf16.mxu0 0
        %495 = vmatmul.mubr.bf16.gmra.mrb[0].mxu0 %v420
        %v496 = vpop.f32.mrb[0].mxu0
        %v497 = vadd.f32 0.0, %v496
        %v498 = vpop.f32.mrb[0].mxu0
        %v499 = vpop.f32.mrb[0].mxu0
        %v500 = vadd.f32 0.0, %v499
        %v501 = vpop.f32.mrb[0].mxu0
        %502 = vmatprep.mubr.bf16.mxu0 0
        %503 = vmatmul.mubr.bf16.gmra.mrb[0].mxu0 %v423
        %v504 = vpop.f32.mrb[0].mxu0
        %v505 = vadd.f32 0.0, %v504
        %v506 = vpop.f32.mrb[0].mxu0
        %v507 = vpop.f32.mrb[0].mxu0
        %v508 = vadd.f32 0.0, %v507
        %v509 = vpop.f32.mrb[0].mxu0
        %510 = vmatprep.mubr.bf16.mxu0 0
        %511 = vmatmul.mubr.bf16.gmra.mrb[0].mxu0 %v426
        %v512 = vpop.f32.mrb[0].mxu0
        %v513 = vadd.f32 0.0, %v512
        %v514 = vpop.f32.mrb[0].mxu0
        %v515 = vpop.f32.mrb[0].mxu0
        %v516 = vadd.f32 0.0, %v515
        %v517 = vpop.f32.mrb[0].mxu0
        %518 = vmatprep.mubr.bf16.mxu0 0
        %519 = vmatmul.mubr.bf16.gmra.mrb[0].mxu0 %v429
        %v520 = vpop.f32.mrb[0].mxu0
        %v521 = vadd.f32 0.0, %v520
        %v522 = vpop.f32.mrb[0].mxu0
        %v523 = vpop.f32.mrb[0].mxu0
        %v524 = vadd.f32 0.0, %v523
        %v525 = vpop.f32.mrb[0].mxu0
        %526 = vmatprep.mubr.bf16.mxu0 0
        %527 = vmatmul.mubr.bf16.gmra.mrb[0].mxu0 %v432
        %v528 = vpop.f32.mrb[0].mxu0
        %v529 = vadd.f32 0.0, %v528
        %v530 = vpop.f32.mrb[0].mxu0
        %v531 = vpop.f32.mrb[0].mxu0
        %v532 = vadd.f32 0.0, %v531
        %v533 = vpop.f32.mrb[0].mxu0
        %534 = vdwg.mxu0
        %v538 = vunpack.c.l.b16 %v405
        %v539 = vunpack.c.l.b16 %v406
        %v540 = vunpack.c.l.b16 %v407
        %v541 = vpack.c.b16 %v539, %v538
        %v542 = vpack.c.b16 %v540, %v540
        %vm544 = vcmask 138240
        %v546 = vsel %vm544, %v373, 0
        %v549 = vsel %vm544, %v374, 0
        %v552 = vsel %vm544, %v375, 0
        %v555 = vsel %vm544, %v376, 0
        %v558 = vsel %vm544, %v377, 0
        %v561 = vsel %vm544, %v378, 0
        %v564 = vsel %vm544, %v379, 0
        %v567 = vsel %vm544, %v380, 0
        %vm569 = vcmask 1040384
        %v570 = vsel 0, 4294967295, 65535
        %v571 = vsel %vm569, %v570, 0
        %v573 = vand.u32 %v542, %v571
        %575 = vmatprep.subr.bf16.mxu0 0
        %576 = vmatpush1.bf16.msra.mxu0 %v541
        %577 = vmatprep.subr.bf16.mxu0 0
        %578 = vmatpush1.bf16.msra.mxu0 %v573
        %579 = vmatprep.subr.bf16.mxu0 0
        %580 = vmatpush1.bf16.msra.mxu0 0
        %581 = vmatprep.subr.bf16.mxu0 0
        %582 = vmatpush1.bf16.msra.mxu0 0
        %583 = vmatprep.subr.bf16.mxu0 0
        %584 = vmatpush1.bf16.msra.mxu0 0
        %585 = vmatprep.subr.bf16.mxu0 0
        %586 = vmatpush1.bf16.msra.mxu0 0
        %587 = vmatprep.subr.bf16.mxu0 0
        %588 = vmatpush1.bf16.msra.mxu0 0
        %589 = vmatprep.subr.bf16.mxu0 0
        %590 = vmatpush1.bf16.msra.mxu0 0
        %591 = vmatprep.subr.bf16.mxu0 0
        %592 = vmatpush1.bf16.msra.mxu0 0
        %593 = vmatprep.subr.bf16.mxu0 0
        %594 = vmatpush1.bf16.msra.mxu0 0
        %595 = vmatprep.subr.bf16.mxu0 0
        %596 = vmatpush1.bf16.msra.mxu0 0
        %597 = vmatprep.subr.bf16.mxu0 0
        %598 = vmatpush1.bf16.msra.mxu0 0
        %599 = vmatprep.subr.bf16.mxu0 0
        %600 = vmatpush1.bf16.msra.mxu0 0
        %601 = vmatprep.subr.bf16.mxu0 0
        %602 = vmatpush1.bf16.msra.mxu0 0
        %603 = vmatprep.subr.bf16.mxu0 0
        %604 = vmatpush1.bf16.msra.mxu0 0
        %605 = vmatprep.subr.bf16.mxu0 0
        %606 = vmatpush1.bf16.msra.mxu0 0
        %607 = vmatprep.mubr.bf16.mxu0 0
        %608 = vmatmul.mubr.bf16.gmra.mrb[0].mxu0 %v546
        %v609 = vpop.f32.mrb[0].mxu0
        %v610 = vadd.f32 %v473, %v609
        %v611 = vpop.f32.mrb[0].mxu0
        %v612 = vpop.f32.mrb[0].mxu0
        %v613 = vadd.f32 %v476, %v612
        %v614 = vpop.f32.mrb[0].mxu0
        %615 = vmatprep.mubr.bf16.mxu0 0
        %616 = vmatmul.mubr.bf16.gmra.mrb[0].mxu0 %v549
        %v617 = vpop.f32.mrb[0].mxu0
        %v618 = vadd.f32 %v481, %v617
        %v619 = vpop.f32.mrb[0].mxu0
        %v620 = vpop.f32.mrb[0].mxu0
        %v621 = vadd.f32 %v484, %v620
        %v622 = vpop.f32.mrb[0].mxu0
        %623 = vmatprep.mubr.bf16.mxu0 0
        %624 = vmatmul.mubr.bf16.gmra.mrb[0].mxu0 %v552
        %v625 = vpop.f32.mrb[0].mxu0
        %v626 = vadd.f32 %v489, %v625
        %v627 = vpop.f32.mrb[0].mxu0
        %v628 = vpop.f32.mrb[0].mxu0
        %v629 = vadd.f32 %v492, %v628
        %v630 = vpop.f32.mrb[0].mxu0
        %631 = vmatprep.mubr.bf16.mxu0 0
        %632 = vmatmul.mubr.bf16.gmra.mrb[0].mxu0 %v555
        %v633 = vpop.f32.mrb[0].mxu0
        %v634 = vadd.f32 %v497, %v633
        %v635 = vpop.f32.mrb[0].mxu0
        %v636 = vpop.f32.mrb[0].mxu0
        %v637 = vadd.f32 %v500, %v636
        %v638 = vpop.f32.mrb[0].mxu0
        %639 = vmatprep.mubr.bf16.mxu0 0
        %640 = vmatmul.mubr.bf16.gmra.mrb[0].mxu0 %v558
        %v641 = vpop.f32.mrb[0].mxu0
        %v642 = vadd.f32 %v505, %v641
        %v643 = vpop.f32.mrb[0].mxu0
        %v644 = vpop.f32.mrb[0].mxu0
        %v645 = vadd.f32 %v508, %v644
        %v646 = vpop.f32.mrb[0].mxu0
        %647 = vmatprep.mubr.bf16.mxu0 0
        %648 = vmatmul.mubr.bf16.gmra.mrb[0].mxu0 %v561
        %v649 = vpop.f32.mrb[0].mxu0
        %v650 = vadd.f32 %v513, %v649
        %v651 = vpop.f32.mrb[0].mxu0
        %v652 = vpop.f32.mrb[0].mxu0
        %v653 = vadd.f32 %v516, %v652
        %v654 = vpop.f32.mrb[0].mxu0
        %655 = vmatprep.mubr.bf16.mxu0 0
        %656 = vmatmul.mubr.bf16.gmra.mrb[0].mxu0 %v564
        %v657 = vpop.f32.mrb[0].mxu0
        %v658 = vadd.f32 %v521, %v657
        %v659 = vpop.f32.mrb[0].mxu0
        %v660 = vpop.f32.mrb[0].mxu0
        %v661 = vadd.f32 %v524, %v660
        %v662 = vpop.f32.mrb[0].mxu0
        %663 = vmatprep.mubr.bf16.mxu0 0
        %664 = vmatmul.mubr.bf16.gmra.mrb[0].mxu0 %v567
        %v665 = vpop.f32.mrb[0].mxu0
        %v666 = vadd.f32 %v529, %v665
        %v667 = vpop.f32.mrb[0].mxu0
        %v668 = vpop.f32.mrb[0].mxu0
        %v669 = vadd.f32 %v532, %v668
        %v670 = vpop.f32.mrb[0].mxu0
        %671 = vdwg.mxu0
        %v672 = vld [vmem:[%s4] sm:$0x1]
        %v674 = vlaneseq
        %v675 = vshrl.u32 %v674, 7
        %v676 = vsub.s32 0, %v675
        %v677 = vrot.slane %v672, %v676
        %v679 = vadd.f32 %v610, %v677
        %v680 = vadd.f32 %v613, %v677
        %v681 = vadd.f32 %v618, %v677
        %v682 = vadd.f32 %v621, %v677
        %v683 = vadd.f32 %v626, %v677
        %v684 = vadd.f32 %v629, %v677
        %v685 = vadd.f32 %v634, %v677
        %v686 = vadd.f32 %v637, %v677
        %v687 = vadd.f32 %v642, %v677
        %v688 = vadd.f32 %v645, %v677
        %v689 = vadd.f32 %v650, %v677
        %v690 = vadd.f32 %v653, %v677
        %v691 = vadd.f32 %v658, %v677
        %v692 = vadd.f32 %v661, %v677
        %v693 = vadd.f32 %v666, %v677
        %v694 = vadd.f32 %v669, %v677
        %v695 = vmax.f32 %v679, 0.0
        %v696 = vmax.f32 %v680, 0.0
        %v697 = vmax.f32 %v681, 0.0
        %v698 = vmax.f32 %v682, 0.0
        %v699 = vmax.f32 %v683, 0.0
        %v700 = vmax.f32 %v684, 0.0
        %v701 = vmax.f32 %v685, 0.0
        %v702 = vmax.f32 %v686, 0.0
        %v703 = vmax.f32 %v687, 0.0
        %v704 = vmax.f32 %v688, 0.0
        %v705 = vmax.f32 %v689, 0.0
        %v706 = vmax.f32 %v690, 0.0
        %v707 = vmax.f32 %v691, 0.0
        %v708 = vmax.f32 %v692, 0.0
        %v709 = vmax.f32 %v693, 0.0
        %v710 = vmax.f32 %v694, 0.0
        %v711 = vpack.c.bf16 %v696, %v695
        %v712 = vpack.c.bf16 %v698, %v697
        %v713 = vpack.c.bf16 %v700, %v699
        %v714 = vpack.c.bf16 %v702, %v701
        %v715 = vpack.c.bf16 %v704, %v703
        %v716 = vpack.c.bf16 %v706, %v705
        %v717 = vpack.c.bf16 %v708, %v707
        %v718 = vpack.c.bf16 %v710, %v709
        %v719 = vld [vmem:[%s5] sm:$0xf]
        %v720 = vld [vmem:[%s5 + $0x4] sm:$0xf]
        %v721 = vld [vmem:[%s5 + $0x8] sm:$0xf]
        %v722 = vld [vmem:[%s5 + $0xc] sm:$0xf]
        %v723 = vld [vmem:[%s5 + $0x10] sm:$0xf]
        %v724 = vld [vmem:[%s5 + $0x14] sm:$0xf]
        %v725 = vld [vmem:[%s5 + $0x18] sm:$0xf]
        %v726 = vld [vmem:[%s5 + $0x1c] sm:$0xf]
        %v727 = vld [vmem:[%s5 + $0x20] sm:$0xf]
        %v728 = vld [vmem:[%s5 + $0x24] sm:$0xf]
        %v729 = vld [vmem:[%s5 + $0x28] sm:$0xf]
        %v730 = vld [vmem:[%s5 + $0x2c] sm:$0xf]
        %v731 = vld [vmem:[%s5 + $0x30] sm:$0xf]
        %v732 = vld [vmem:[%s5 + $0x34] sm:$0xf]
        %v733 = vld [vmem:[%s5 + $0x38] sm:$0xf]
        %v734 = vld [vmem:[%s5 + $0x3c] sm:$0xf]
        %v735 = vld [vmem:[%s6] sm:$0x1]
        %v737 = vlaneseq
        %v738 = vshrl.u32 %v737, 7
        %v739 = vsub.s32 0, %v738
        %v740 = vrot.slane %v735, %v739
        %v758 = vunpack.c.l.b16 %v719
        %v759 = vunpack.c.l.b16 %v720
        %v760 = vunpack.c.l.b16 %v721
        %v761 = vunpack.c.l.b16 %v722
        %v762 = vunpack.c.l.b16 %v723
        %v763 = vunpack.c.l.b16 %v724
        %v764 = vunpack.c.l.b16 %v725
        %v765 = vunpack.c.l.b16 %v726
        %v766 = vunpack.c.l.b16 %v727
        %v767 = vunpack.c.l.b16 %v728
        %v768 = vunpack.c.l.b16 %v729
        %v769 = vunpack.c.l.b16 %v730
        %v770 = vunpack.c.l.b16 %v731
        %v771 = vunpack.c.l.b16 %v732
        %v772 = vunpack.c.l.b16 %v733
        %v773 = vunpack.c.l.b16 %v734
        %v774 = vpack.c.b16 %v759, %v758
        %v775 = vpack.c.b16 %v761, %v760
        %v776 = vpack.c.b16 %v763, %v762
        %v777 = vpack.c.b16 %v765, %v764
        %v778 = vpack.c.b16 %v767, %v766
        %v779 = vpack.c.b16 %v769, %v768
        %v780 = vpack.c.b16 %v771, %v770
        %v781 = vpack.c.b16 %v773, %v772
        %790 = vmatprep.subr.bf16.mxu0 0
        %791 = vmatpush1.bf16.msra.mxu0 %v774
        %792 = vmatprep.subr.bf16.mxu0 0
        %793 = vmatpush1.bf16.msra.mxu0 %v775
        %794 = vmatprep.subr.bf16.mxu0 0
        %795 = vmatpush1.bf16.msra.mxu0 %v776
        %796 = vmatprep.subr.bf16.mxu0 0
        %797 = vmatpush1.bf16.msra.mxu0 %v777
        %798 = vmatprep.subr.bf16.mxu0 0
        %799 = vmatpush1.bf16.msra.mxu0 %v778
        %800 = vmatprep.subr.bf16.mxu0 0
        %801 = vmatpush1.bf16.msra.mxu0 %v779
        %802 = vmatprep.subr.bf16.mxu0 0
        %803 = vmatpush1.bf16.msra.mxu0 %v780
        %804 = vmatprep.subr.bf16.mxu0 0
        %805 = vmatpush1.bf16.msra.mxu0 %v781
        %806 = vmatprep.subr.bf16.mxu0 0
        %807 = vmatpush1.bf16.msra.mxu0 0
        %808 = vmatprep.subr.bf16.mxu0 0
        %809 = vmatpush1.bf16.msra.mxu0 0
        %810 = vmatprep.subr.bf16.mxu0 0
        %811 = vmatpush1.bf16.msra.mxu0 0
        %812 = vmatprep.subr.bf16.mxu0 0
        %813 = vmatpush1.bf16.msra.mxu0 0
        %814 = vmatprep.subr.bf16.mxu0 0
        %815 = vmatpush1.bf16.msra.mxu0 0
        %816 = vmatprep.subr.bf16.mxu0 0
        %817 = vmatpush1.bf16.msra.mxu0 0
        %818 = vmatprep.subr.bf16.mxu0 0
        %819 = vmatpush1.bf16.msra.mxu0 0
        %820 = vmatprep.subr.bf16.mxu0 0
        %821 = vmatpush1.bf16.msra.mxu0 0
        %822 = vmatprep.mubr.bf16.mxu0 0
        %823 = vmatmul.mubr.bf16.gmra.mrb[0].mxu0 %v711
        %v824 = vpop.f32.mrb[0].mxu0
        %v825 = vadd.f32 %v740, %v824
        %v826 = vpop.f32.mrb[0].mxu0
        %v827 = vpop.f32.mrb[0].mxu0
        %v828 = vadd.f32 %v740, %v827
        %v829 = vpop.f32.mrb[0].mxu0
        %830 = vmatprep.mubr.bf16.mxu0 0
        %831 = vmatmul.mubr.bf16.gmra.mrb[0].mxu0 %v712
        %v832 = vpop.f32.mrb[0].mxu0
        %v833 = vadd.f32 %v740, %v832
        %v834 = vpop.f32.mrb[0].mxu0
        %v835 = vpop.f32.mrb[0].mxu0
        %v836 = vadd.f32 %v740, %v835
        %v837 = vpop.f32.mrb[0].mxu0
        %838 = vmatprep.mubr.bf16.mxu0 0
        %839 = vmatmul.mubr.bf16.gmra.mrb[0].mxu0 %v713
        %v840 = vpop.f32.mrb[0].mxu0
        %v841 = vadd.f32 %v740, %v840
        %v842 = vpop.f32.mrb[0].mxu0
        %v843 = vpop.f32.mrb[0].mxu0
        %v844 = vadd.f32 %v740, %v843
        %v845 = vpop.f32.mrb[0].mxu0
        %846 = vmatprep.mubr.bf16.mxu0 0
        %847 = vmatmul.mubr.bf16.gmra.mrb[0].mxu0 %v714
        %v848 = vpop.f32.mrb[0].mxu0
        %v849 = vadd.f32 %v740, %v848
        %v850 = vpop.f32.mrb[0].mxu0
        %v851 = vpop.f32.mrb[0].mxu0
        %v852 = vadd.f32 %v740, %v851
        %v853 = vpop.f32.mrb[0].mxu0
        %854 = vmatprep.mubr.bf16.mxu0 0
        %855 = vmatmul.mubr.bf16.gmra.mrb[0].mxu0 %v715
        %v856 = vpop.f32.mrb[0].mxu0
        %v857 = vadd.f32 %v740, %v856
        %v858 = vpop.f32.mrb[0].mxu0
        %v859 = vpop.f32.mrb[0].mxu0
        %v860 = vadd.f32 %v740, %v859
        %v861 = vpop.f32.mrb[0].mxu0
        %862 = vmatprep.mubr.bf16.mxu0 0
        %863 = vmatmul.mubr.bf16.gmra.mrb[0].mxu0 %v716
        %v864 = vpop.f32.mrb[0].mxu0
        %v865 = vadd.f32 %v740, %v864
        %v866 = vpop.f32.mrb[0].mxu0
        %v867 = vpop.f32.mrb[0].mxu0
        %v868 = vadd.f32 %v740, %v867
        %v869 = vpop.f32.mrb[0].mxu0
        %870 = vmatprep.mubr.bf16.mxu0 0
        %871 = vmatmul.mubr.bf16.gmra.mrb[0].mxu0 %v717
        %v872 = vpop.f32.mrb[0].mxu0
        %v873 = vadd.f32 %v740, %v872
        %v874 = vpop.f32.mrb[0].mxu0
        %v875 = vpop.f32.mrb[0].mxu0
        %v876 = vadd.f32 %v740, %v875
        %v877 = vpop.f32.mrb[0].mxu0
        %878 = vmatprep.mubr.bf16.mxu0 0
        %879 = vmatmul.mubr.bf16.gmra.mrb[0].mxu0 %v718
        %v880 = vpop.f32.mrb[0].mxu0
        %v881 = vadd.f32 %v740, %v880
        %v882 = vpop.f32.mrb[0].mxu0
        %v883 = vpop.f32.mrb[0].mxu0
        %v884 = vadd.f32 %v740, %v883
        %v885 = vpop.f32.mrb[0].mxu0
        %886 = vdwg.mxu0
        %v887 = vmax.f32 %v825, 0.0
        %v888 = vmax.f32 %v828, 0.0
        %v889 = vmax.f32 %v833, 0.0
        %v890 = vmax.f32 %v836, 0.0
        %v891 = vmax.f32 %v841, 0.0
        %v892 = vmax.f32 %v844, 0.0
        %v893 = vmax.f32 %v849, 0.0
        %v894 = vmax.f32 %v852, 0.0
        %v895 = vmax.f32 %v857, 0.0
        %v896 = vmax.f32 %v860, 0.0
        %v897 = vmax.f32 %v865, 0.0
        %v898 = vmax.f32 %v868, 0.0
        %v899 = vmax.f32 %v873, 0.0
        %v900 = vmax.f32 %v876, 0.0
        %v901 = vmax.f32 %v881, 0.0
        %v902 = vmax.f32 %v884, 0.0
        %v903 = vpack.c.bf16 %v888, %v887
        %v904 = vpack.c.bf16 %v890, %v889
        %v905 = vpack.c.bf16 %v892, %v891
        %v906 = vpack.c.bf16 %v894, %v893
        %v907 = vpack.c.bf16 %v896, %v895
        %v908 = vpack.c.bf16 %v898, %v897
        %v909 = vpack.c.bf16 %v900, %v899
        %v910 = vpack.c.bf16 %v902, %v901
        %v911 = vld [vmem:[%s7] sm:$0x1]
        %v912 = vld [vmem:[#allocation2] sm:$0x1]
        %914 = vset.pattern.permute.xlu0 0
        %915 = vperm.xlu0 %914, %v912
        %v916 = vpop.permute.xlu0 %915
        %v918 = vlaneseq
        %v919 = vshrl.u32 %v918, 7
        %v920 = vsub.s32 0, %v919
        %v921 = vrot.slane %v916, %v920
        %922 = vmatprep.subr.bf16.mxu0 0
        %923 = vmatpush1.bf16.xpose.msra.mxu0 %v903
        %924 = vmatprep.subr.bf16.mxu0 0
        %925 = vmatpush1.bf16.xpose.msra.mxu0 %v904
        %926 = vmatprep.subr.bf16.mxu0 0
        %927 = vmatpush1.bf16.xpose.msra.mxu0 %v905
        %928 = vmatprep.subr.bf16.mxu0 0
        %929 = vmatpush1.bf16.xpose.msra.mxu0 %v906
        %930 = vmatprep.subr.bf16.mxu0 0
        %931 = vmatpush1.bf16.xpose.msra.mxu0 %v907
        %932 = vmatprep.subr.bf16.mxu0 0
        %933 = vmatpush1.bf16.xpose.msra.mxu0 %v908
        %934 = vmatprep.subr.bf16.mxu0 0
        %935 = vmatpush1.bf16.xpose.msra.mxu0 %v909
        %936 = vmatprep.subr.bf16.mxu0 0
        %937 = vmatpush1.bf16.xpose.msra.mxu0 %v910
        %938 = vmatprep.subr.bf16.mxu0 0
        %939 = vmatpush1.bf16.xpose.msra.mxu0 0
        %940 = vmatprep.subr.bf16.mxu0 0
        %941 = vmatpush1.bf16.xpose.msra.mxu0 0
        %942 = vmatprep.subr.bf16.mxu0 0
        %943 = vmatpush1.bf16.xpose.msra.mxu0 0
        %944 = vmatprep.subr.bf16.mxu0 0
        %945 = vmatpush1.bf16.xpose.msra.mxu0 0
        %946 = vmatprep.subr.bf16.mxu0 0
        %947 = vmatpush1.bf16.xpose.msra.mxu0 0
        %948 = vmatprep.subr.bf16.mxu0 0
        %949 = vmatpush1.bf16.xpose.msra.mxu0 0
        %950 = vmatprep.subr.bf16.mxu0 0
        %951 = vmatpush1.bf16.xpose.msra.mxu0 0
        %952 = vmatprep.subr.bf16.mxu0 0
        %953 = vmatpush1.bf16.xpose.msra.mxu0 0
        %954 = vmatprep.mubr.bf16.mxu0 0
        %955 = vmatmul.mubr.bf16.gmra.mrb[0].mxu0 %v911
        %v956 = vpop.f32.mrb[0].mxu0
        %v957 = vadd.f32 %v921, %v956
        %v958 = vpop.f32.mrb[0].mxu0
        %v959 = vpop.f32.mrb[0].mxu0
        %v960 = vpop.f32.mrb[0].mxu0
        %961 = vdwg.mxu0
        %962 = vst [vmem:[%s343] sm:$0x1] %v957
        %s963 = sand.u32 %s232, 1
        %s964 = scalar_lea.sflag [#allocation4], %s963
        %s965 = sand.u32 %s232, 1
        %s966 = scalar_lea.vmem [#allocation3], %s965
        // Predicated region
        $region57: #{tpu_custom_call.1} parent=55 // pred_check
          %p967 = pneg %p242
        $region58: #{tpu_custom_call.1} parent=55 // pred_check_branch
          %969 = sbr.rel (%p967) target = $region60
        $region59: #{tpu_custom_call.1} parent=55 // pred_region
          %s971 = ssub.s32 16, 16
          %972 = vsyncadd %s964, %s971
          %s973 = smul.addr %s25, 16
          %s974 = scalar_lea.hbm %s9, %s973
          %s976 = sshll.u32 %s966, 4
          %s977 = int_to_ptr.vmem [resolvable:$true] %s976
          %979 = dma.vmem_to_hbm [thread:$0]  %s977, 16, %s974, %s964
        $region60: #{tpu_custom_call.1} parent=55 // pred_fallthru
          _
      $region56: #{tpu_custom_call.1} parent=5 // pred_fallthru
        _
      %p980 = scmp.le.s32.totalorder 2, %s20
      // Predicated region
      $region61: #{tpu_custom_call.1} parent=5 // pred_check
        %p981 = pneg %p980
      $region62: #{tpu_custom_call.1} parent=5 // pred_check_branch
        %983 = sbr.rel (%p981) target = $region64
      $region63: #{tpu_custom_call.1} parent=5 // pred_region
        %s984 = ssub.s32 %s20, 2
        // Predicated region
        $region65: #{tpu_custom_call.1} parent=63 // pred_check
          %p985 = pneg %p248
        $region66: #{tpu_custom_call.1} parent=63 // pred_check_branch
          %987 = sbr.rel (%p985) target = $region68
        $region67: #{tpu_custom_call.1} parent=63 // pred_region
          %s988 = sand.u32 %s233, 1
          %s989 = scalar_lea.sflag [#allocation4], %s988
          %s990 = sand.u32 %s233, 1
          %s991 = scalar_lea.vmem [#allocation3], %s990
          %992 = dma.done %s989, 16
        $region68: #{tpu_custom_call.1} parent=63 // pred_fallthru
          _
      $region64: #{tpu_custom_call.1} parent=5 // pred_fallthru
        _
    $region6: #{tpu_custom_call.1} parent=1 // loop_footer
      %s24 = sadd.s32 1, %s20
    $region7: #{tpu_custom_call.1} parent=1 // loop_footer_branch
      %19 = sbr.rel target = $region3
    $region8: #{tpu_custom_call.1} parent=1 // loop_exit
      _
    %993 = vsyncpa [#allocation4], 1
    %s994 = scalar_lea.sflag [#allocation4], 1
    %995 = vsyncpa %s994, 1

</llo_original>
